<compile_context>
chip_gen: v7x
topology: tpu7x:2x2x1
jax: 0.10.0
libtpu: 0.0.40
codegen_flags: <defaults>
</compile_context>

<pallas_src>
import jax
import jax.numpy as jnp
from jax import lax
from jax.experimental import pallas as pl
from jax.experimental.pallas import tpu as pltpu


def multitask_kernel(x_ref, bias_ref, usum_ref, w1_ref, b1_ref, w2_ref, b2_ref,
                     pred_ref, score_ref):
    x = x_ref[...]                                      # (TB, 3D), compute dtype

    # predictions[j] = dot(sum_i u_i, v_j) + user_bias[j] + item_bias[j]
    # usum_ref = [0 | sum(u) | 0] (1, 3D): contracting against x picks out v_j,
    # so the result is already lane-major (1, TB) -- no relayout, no extra stream.
    pred_row = lax.dot_general(usum_ref[...], x,
                               (((1,), (1,)), ((), ())),
                               preferred_element_type=jnp.float32)   # (1, TB)
    pred_ref[...] = pred_row + bias_ref[...]

    # score = MLP(concat([u, v, u*v])) = relu(x @ W1 + b1) @ W2 + b2
    h = (jnp.dot(x, w1_ref[...], preferred_element_type=jnp.float32)
         + b1_ref[...])                                              # (TB, H) f32
    h = jnp.maximum(h, 0.0).astype(w2_ref.dtype)
    # (1,H) . (TB,H)^T -> (1,TB): lane-dense, unmasked vst on the way out.
    score_row = lax.dot_general(w2_ref[...], h,
                                (((1,), (1,)), ((), ())),
                                preferred_element_type=jnp.float32)  # (1, TB)
    score_ref[...] = score_row + b2_ref[0, 0]


def multitask_forward(user_ids, item_ids, params, tile_b=4096,
                      compute_dtype=jnp.bfloat16):
    Q, U, A, Bemb, W1, b1, W2, b2 = params
    B = user_ids.shape[0]
    D = Q.shape[1]
    H = W1.shape[1]

    # --- tile / grid geometry ---
    bp = max(128, ((B + 127) // 128) * 128)
    # Cap the tile so the grid has >= 2 steps when possible (v7x has 2 TCs).
    tile = min(tile_b, max(128, (bp // 2 // 128) * 128))
    bp = ((bp + tile - 1) // tile) * tile
    pad = bp - B

    # --- glue: pad ids (not embeddings), gather, build fused MLP input ---
    uid = jnp.pad(user_ids, (0, pad)) if pad else user_ids   # pad rows gather id 0
    iid = jnp.pad(item_ids, (0, pad)) if pad else item_ids   # (sliced off at end)
    ue = Q[uid]                                              # (bp, D)
    ie = U[iid]                                              # (bp, D)
    # user+item biases pre-added into a single lane-dense row.
    bias_row = (A[uid][:, 0] + Bemb[iid][:, 0]).reshape(1, bp).astype(jnp.float32)

    # Fused MLP input (one wide-K matmul operand).
    x = jnp.concatenate([ue, ie, ue * ie], axis=1)           # (bp, 3D)

    # Global user-embedding sum over REAL rows only, placed at lanes [D:2D] so
    # dot(usum_ext, x_j) == dot(sum_i u_i, v_j).
    ue_sum = jnp.sum(ue[:B], axis=0, keepdims=True)          # (1, D)
    zeros_d = jnp.zeros((1, D), jnp.float32)
    usum_ext = jnp.concatenate([zeros_d, ue_sum, zeros_d], axis=1)   # (1, 3D)

    # Matmul operands in compute_dtype (bf16 by default); accumulation stays f32.
    x_c = x.astype(compute_dtype)
    usum_c = usum_ext.astype(compute_dtype)
    w1_c = W1.astype(compute_dtype)                          # (3D, H), unsplit
    w2_row = W2.reshape(1, H).astype(compute_dtype)          # (H,1) -> (1,H) row
    b1_2d = b1.reshape(1, H).astype(jnp.float32)
    b2_2d = b2.reshape(1, 1).astype(jnp.float32)             # SMEM scalar

    grid = (bp // tile,)
    pred2, score2 = pl.pallas_call(
        multitask_kernel,
        out_shape=(jax.ShapeDtypeStruct((1, bp), jnp.float32),
                   jax.ShapeDtypeStruct((1, bp), jnp.float32)),
        grid_spec=pltpu.PrefetchScalarGridSpec(
            num_scalar_prefetch=0,
            grid=grid,
            in_specs=[
                pl.BlockSpec((tile, 3 * D), lambda i: (i, 0)),      # x tile
                pl.BlockSpec((1, tile), lambda i: (0, i)),          # bias row
                pl.BlockSpec((1, 3 * D), lambda i: (0, 0)),         # [0|sum u|0]
                pl.BlockSpec((3 * D, H), lambda i: (0, 0)),         # W1 (resident)
                pl.BlockSpec((1, H), lambda i: (0, 0)),             # b1
                pl.BlockSpec((1, H), lambda i: (0, 0)),             # W2 row
                pl.BlockSpec(memory_space=pltpu.MemorySpace.SMEM),  # b2 scalar
            ],
            out_specs=[
                pl.BlockSpec((1, tile), lambda i: (0, i)),          # predictions
                pl.BlockSpec((1, tile), lambda i: (0, i)),          # score
            ],
        ),
        compiler_params=pltpu.CompilerParams(
            dimension_semantics=("parallel",)),
    )(x_c, bias_row, usum_c, w1_c, b1_2d, w2_row, b2_2d)

    return pred2[0, :B], score2[0, :B]   # each (B,), matching PyTorch .squeeze()


def make_params(key, num_users, num_items, embedding_dim=32, layer_sizes=(96, 64)):
    k = jax.random.split(key, 6)
    # ScaledEmbedding: normal(0, 1/embedding_dim)
    Q = (jax.random.normal(k[0], (num_users, embedding_dim)) / embedding_dim).astype(jnp.float32)
    U = (jax.random.normal(k[1], (num_items, embedding_dim)) / embedding_dim).astype(jnp.float32)
    # ZeroEmbedding: zeros
    A = jnp.zeros((num_users, 1), jnp.float32)
    Bemb = jnp.zeros((num_items, 1), jnp.float32)
    # MLP: Linear(96 -> 64), ReLU, Linear(64 -> 1); deterministic synthetic init
    W1 = (jax.random.normal(k[2], (layer_sizes[0], layer_sizes[1])) * 0.1).astype(jnp.float32)
    b1 = (jax.random.normal(k[3], (layer_sizes[1],)) * 0.1).astype(jnp.float32)
    W2 = (jax.random.normal(k[4], (layer_sizes[1], 1)) * 0.1).astype(jnp.float32)
    b2 = (jax.random.normal(k[5], (1,)) * 0.1).astype(jnp.float32)
    return (Q, U, A, Bemb, W1, b1, W2, b2)


def reference_forward(user_ids, item_ids, params):
    Q, U, A, Bemb, W1, b1, W2, b2 = params
    ue, ie = Q[user_ids], U[item_ids]
    ub, ib = A[user_ids], Bemb[item_ids]
    pred = jnp.matmul(ue, ie.T).sum(0) + ub.squeeze() + ib.squeeze()
    x = jnp.concatenate([ue, ie, ue * ie], axis=1)
    h = jnp.maximum(x @ W1 + b1, 0.0)
    score = (h @ W2 + b2).squeeze()
    return pred, score


if __name__ == "__main__":
    key = jax.random.PRNGKey(0)
    kp, ku, ki, ku2, ki2 = jax.random.split(key, 5)

    num_users, num_items = 10, 12
    embedding_dim = 32
    params = make_params(kp, num_users, num_items, embedding_dim)

    # 1) Small batch, f32 matmul operands: tight check (single grid step).
    batch = 8
    user_ids = jax.random.randint(ku, (batch,), 0, num_users)
    item_ids = jax.random.randint(ki, (batch,), 0, num_items)
    pred, score = multitask_forward(user_ids, item_ids, params,
                                    compute_dtype=jnp.float32)
    pred, score = jax.block_until_ready((pred, score))
    pred_ref, score_ref = reference_forward(user_ids, item_ids, params)
    assert pred.shape == (batch,) and score.shape == (batch,)
    assert jnp.allclose(pred, pred_ref, atol=1e-5, rtol=1e-5)
    assert jnp.allclose(score, score_ref, atol=1e-5, rtol=1e-5)

    # 2) Multi-tile check (grid > 1, ragged padding), f32 operands, small tile.
    batch2 = 200
    user_ids2 = jax.random.randint(ku2, (batch2,), 0, num_users)
    item_ids2 = jax.random.randint(ki2, (batch2,), 0, num_items)
    pred2, score2 = multitask_forward(user_ids2, item_ids2, params,
                                      tile_b=128, compute_dtype=jnp.float32)
    pred2, score2 = jax.block_until_ready((pred2, score2))
    pred2_ref, score2_ref = reference_forward(user_ids2, item_ids2, params)
    assert pred2.shape == (batch2,) and score2.shape == (batch2,)
    assert jnp.allclose(pred2, pred2_ref, atol=1e-4, rtol=1e-5)
    assert jnp.allclose(score2, score2_ref, atol=1e-5, rtol=1e-5)

    # 3) Default perf config: bf16 matmul operands (f32 accumulation), big tiles.
    pred3, score3 = multitask_forward(user_ids2, item_ids2, params)
    pred3, score3 = jax.block_until_ready((pred3, score3))
    assert pred3.shape == (batch2,) and score3.shape == (batch2,)
    assert jnp.allclose(pred3, pred2_ref, atol=2e-2, rtol=2e-2)
    assert jnp.allclose(score3, score2_ref, atol=2e-2, rtol=2e-2)

    print("KERNEL_OK")
</pallas_src>

<mosaic_0001>
module attributes {stable_mosaic.version = 11 : i64} {
  func.func @multitask_kernel(%arg0: i32, %arg1: memref<128x96xf32, #tpu.memory_space<vmem>>, %arg2: memref<1x128xf32, #tpu.memory_space<vmem>>, %arg3: memref<1x96xf32, #tpu.memory_space<vmem>>, %arg4: memref<96x64xf32, #tpu.memory_space<vmem>>, %arg5: memref<1x64xf32, #tpu.memory_space<vmem>>, %arg6: memref<1x64xf32, #tpu.memory_space<vmem>>, %arg7: memref<1x1xf32, #tpu.memory_space<smem>>, %arg8: memref<1x128xf32, #tpu.memory_space<vmem>>, %arg9: memref<1x128xf32, #tpu.memory_space<vmem>>) attributes {dimension_semantics = [#tpu.dimension_semantics<parallel>], iteration_bounds = array<i64: 1>, scalar_prefetch = 0 : i64, scratch_operands = 0 : i64, tpu.core_type = #tpu.core_type<tc>, window_params = [{transform_indices = @transform_0, window_bounds = array<i64: 128, 96>}, {transform_indices = @transform_1, window_bounds = array<i64: 1, 128>}, {pipeline_mode = #tpu.pipeline_mode<synchronous>, transform_indices = @transform_2, window_bounds = array<i64: 1, 96>}, {pipeline_mode = #tpu.pipeline_mode<synchronous>, transform_indices = @transform_3, window_bounds = array<i64: 96, 64>}, {pipeline_mode = #tpu.pipeline_mode<synchronous>, transform_indices = @transform_4, window_bounds = array<i64: 1, 64>}, {pipeline_mode = #tpu.pipeline_mode<synchronous>, transform_indices = @transform_5, window_bounds = array<i64: 1, 64>}, {transform_indices = @transform_6, window_bounds = array<i64: 1, 1>}, {transform_indices = @transform_7, window_bounds = array<i64: 1, 128>}, {transform_indices = @transform_8, window_bounds = array<i64: 1, 128>}]} {
    %c0 = arith.constant 0 : index
    %c0_0 = arith.constant 0 : index
    %0 = vector.load %arg1[%c0, %c0_0] : memref<128x96xf32, #tpu.memory_space<vmem>>, vector<128x96xf32>
    %c0_1 = arith.constant 0 : index
    %c0_2 = arith.constant 0 : index
    %1 = vector.load %arg3[%c0_1, %c0_2] : memref<1x96xf32, #tpu.memory_space<vmem>>, vector<1x96xf32>
    %cst = arith.constant dense<0.000000e+00> : vector<1x128xf32>
    %2 = tpu.matmul %1, %0, %cst {dimension_numbers = #tpu.dot_dimension_numbers<[1], [1], [0], [0], [0, 0, 1, 0], [], []>} : vector<1x96xf32>, vector<128x96xf32>, vector<1x128xf32> -> vector<1x128xf32>
    %c0_3 = arith.constant 0 : index
    %c0_4 = arith.constant 0 : index
    %3 = vector.load %arg2[%c0_3, %c0_4] : memref<1x128xf32, #tpu.memory_space<vmem>>, vector<1x128xf32>
    %4 = arith.addf %2, %3 : vector<1x128xf32>
    %c0_5 = arith.constant 0 : index
    %c0_6 = arith.constant 0 : index
    %5 = vector.load %arg8[%c0_5, %c0_6] : memref<1x128xf32, #tpu.memory_space<vmem>>, vector<1x128xf32>
    tpu.vector_store %arg8[%c0_5, %c0_6], %4 {strides = array<i32>} : memref<1x128xf32, #tpu.memory_space<vmem>>, vector<1x128xf32>,
    %c0_7 = arith.constant 0 : index
    %c0_8 = arith.constant 0 : index
    %6 = vector.load %arg4[%c0_7, %c0_8] : memref<96x64xf32, #tpu.memory_space<vmem>>, vector<96x64xf32>
    %cst_9 = arith.constant dense<0.000000e+00> : vector<128x64xf32>
    %7 = tpu.matmul %0, %6, %cst_9 {dimension_numbers = #tpu.dot_dimension_numbers<[1], [0], [0], [1], [0, 0, 1, 1], [], []>} : vector<128x96xf32>, vector<96x64xf32>, vector<128x64xf32> -> vector<128x64xf32>
    %c0_10 = arith.constant 0 : index
    %c0_11 = arith.constant 0 : index
    %8 = vector.load %arg5[%c0_10, %c0_11] : memref<1x64xf32, #tpu.memory_space<vmem>>, vector<1x64xf32>
    %9 = vector.broadcast %8 : vector<1x64xf32> to vector<128x64xf32>
    %10 = arith.addf %7, %9 : vector<128x64xf32>
    %cst_12 = arith.constant 0.000000e+00 : f32
    %11 = vector.broadcast %cst_12 : f32 to vector<128x64xf32>
    %12 = arith.maximumf %10, %11 : vector<128x64xf32>
    %c0_13 = arith.constant 0 : index
    %c0_14 = arith.constant 0 : index
    %13 = vector.load %arg6[%c0_13, %c0_14] : memref<1x64xf32, #tpu.memory_space<vmem>>, vector<1x64xf32>
    %cst_15 = arith.constant dense<0.000000e+00> : vector<1x128xf32>
    %14 = tpu.matmul %13, %12, %cst_15 {dimension_numbers = #tpu.dot_dimension_numbers<[1], [1], [0], [0], [0, 0, 1, 0], [], []>} : vector<1x64xf32>, vector<128x64xf32>, vector<1x128xf32> -> vector<1x128xf32>
    %c0_16 = arith.constant 0 : index
    %c0_17 = arith.constant 0 : index
    %15 = memref.load %arg7[%c0_16, %c0_17] : memref<1x1xf32, #tpu.memory_space<smem>>
    %16 = vector.broadcast %15 : f32 to vector<1x128xf32>
    %17 = arith.addf %14, %16 : vector<1x128xf32>
    %c0_18 = arith.constant 0 : index
    %c0_19 = arith.constant 0 : index
    %18 = vector.load %arg9[%c0_18, %c0_19] : memref<1x128xf32, #tpu.memory_space<vmem>>, vector<1x128xf32>
    tpu.vector_store %arg9[%c0_18, %c0_19], %17 {strides = array<i32>} : memref<1x128xf32, #tpu.memory_space<vmem>>, vector<1x128xf32>,
    return
  }
  func.func @transform_0(%arg0: i32) -> (i32, i32) {
    %c0_i32 = arith.constant 0 : i32
    %c0_i32_0 = arith.constant 0 : i32
    return %arg0, %c0_i32 : i32, i32
  }
  func.func @transform_1(%arg0: i32) -> (i32, i32) {
    %c0_i32 = arith.constant 0 : i32
    %c0_i32_0 = arith.constant 0 : i32
    return %c0_i32, %arg0 : i32, i32
  }
  func.func @transform_2(%arg0: i32) -> (i32, i32) {
    %c0_i32 = arith.constant 0 : i32
    %c0_i32_0 = arith.constant 0 : i32
    %c0_i32_1 = arith.constant 0 : i32
    return %c0_i32, %c0_i32_0 : i32, i32
  }
  func.func @transform_3(%arg0: i32) -> (i32, i32) {
    %c0_i32 = arith.constant 0 : i32
    %c0_i32_0 = arith.constant 0 : i32
    %c0_i32_1 = arith.constant 0 : i32
    return %c0_i32, %c0_i32_0 : i32, i32
  }
  func.func @transform_4(%arg0: i32) -> (i32, i32) {
    %c0_i32 = arith.constant 0 : i32
    %c0_i32_0 = arith.constant 0 : i32
    %c0_i32_1 = arith.constant 0 : i32
    return %c0_i32, %c0_i32_0 : i32, i32
  }
  func.func @transform_5(%arg0: i32) -> (i32, i32) {
    %c0_i32 = arith.constant 0 : i32
    %c0_i32_0 = arith.constant 0 : i32
    %c0_i32_1 = arith.constant 0 : i32
    return %c0_i32, %c0_i32_0 : i32, i32
  }
  func.func @transform_6(%arg0: i32) -> (i32, i32) {
    %c0_i32 = arith.constant 0 : i32
    %c0_i32_0 = arith.constant 0 : i32
    %c0_i32_1 = arith.constant 0 : i32
    return %c0_i32, %c0_i32_0 : i32, i32
  }
  func.func @transform_7(%arg0: i32) -> (i32, i32) {
    %c0_i32 = arith.constant 0 : i32
    %c0_i32_0 = arith.constant 0 : i32
    return %c0_i32, %arg0 : i32, i32
  }
  func.func @transform_8(%arg0: i32) -> (i32, i32) {
    %c0_i32 = arith.constant 0 : i32
    %c0_i32_0 = arith.constant 0 : i32
    return %c0_i32, %arg0 : i32, i32
  }
}

</mosaic_0001>

<llo_original>
// kernel: tpu_custom_call.1
$region0: #{tpu_custom_call.1}
  #allocation0 [shape = 'u32[]', space=smem, size = 0x4, offset = 0x4, fixed_abs, tag = 'smem constant byte address 0x4 - core index']
  #allocation1 [shape = 'u32[144,128]{1,0:T(1,128)}', space=vmem, size = 0x12000, scoped, tag = 'internal scratch']
  #allocation2 [shape = 'f32[1,1]{1,0:T(1,128)S(6)}', space=smem, size = 0x200, scoped, tag = 'scoped memory for tpu_custom_call.1']
  %s0 = inlined_call_operand.vmem [shape: f32[128,96], index: 0, kind: input, shape index: {}]
  %s1 = inlined_call_operand.vmem [shape: f32[1,128], index: 1, kind: input, shape index: {}]
  %s2 = inlined_call_operand.vmem [shape: f32[1,96], index: 2, kind: input, shape index: {}]
  %s3 = inlined_call_operand.vmem [shape: f32[96,64], index: 3, kind: input, shape index: {}]
  %s4 = inlined_call_operand.vmem [shape: f32[1,64], index: 4, kind: input, shape index: {}]
  %s5 = inlined_call_operand.vmem [shape: f32[1,64], index: 5, kind: input, shape index: {}]
  %s6 = inlined_call_operand.<no memory space> [shape: f32[1,1], index: 6, kind: input, shape index: {}]
  %s7 = inlined_call_operand.hbm [shape: f32[1,128], index: 7, kind: output, shape index: {0}]
  %s8 = inlined_call_operand.hbm [shape: f32[1,128], index: 8, kind: output, shape index: {1}]
  %9 = xla_tuple %s7, %s8
  %s10 = sld [smem:[#allocation0]]
  $region46: #{tpu_custom_call.1} parent=0
    _
  %s12 = ssub.s32 1, %s10
  %s13 = scalar_select 0, %s12, %s10
  %14 = sst [smem:[#allocation2]] %s6
  $region1: #{tpu_custom_call.1} parent=0
    #allocation3 [shape = 'u8[512]{0}', space=vmem, size = 0x400, scoped, tag = 'output window, operand 0, single buffered']
    #allocation4 [shape = 's32[1]{0}', space=sflag, size = 0x4, scoped, tag = 'scoped memory for tpu_custom_call.1']
    #allocation5 [shape = 'u8[512]{0}', space=vmem, size = 0x400, scoped, tag = 'output window, operand 1, single buffered']
    #allocation6 [shape = 's32[1]{0}', space=sflag, size = 0x4, scoped, tag = 'scoped memory for tpu_custom_call.1']
    %15 = vsyncpa [#allocation4], 0
    %16 = vsyncpa [#allocation6], 0
    // Predicated region
    $region2: #{tpu_custom_call.1} parent=1 // pred_check
      _
    $region3: #{tpu_custom_call.1} parent=1 // pred_check_branch
      %18 = sbr.rel (0) target = $region5
    $region4: #{tpu_custom_call.1} parent=1 // pred_region
      _
    $region5: #{tpu_custom_call.1} parent=1 // pred_fallthru
      _
    // Predicated region
    $region6: #{tpu_custom_call.1} parent=1 // pred_check
      _
    $region7: #{tpu_custom_call.1} parent=1 // pred_check_branch
      %20 = sbr.rel (0) target = $region9
    $region8: #{tpu_custom_call.1} parent=1 // pred_region
      _
    $region9: #{tpu_custom_call.1} parent=1 // pred_fallthru
      _
    // Predicated region
    $region10: #{tpu_custom_call.1} parent=1 // pred_check
      _
    $region11: #{tpu_custom_call.1} parent=1 // pred_check_branch
      %22 = sbr.rel (0) target = $region13
    $region12: #{tpu_custom_call.1} parent=1 // pred_region
      _
    $region13: #{tpu_custom_call.1} parent=1 // pred_fallthru
      _
    // Predicated region
    $region14: #{tpu_custom_call.1} parent=1 // pred_check
      _
    $region15: #{tpu_custom_call.1} parent=1 // pred_check_branch
      %24 = sbr.rel (0) target = $region17
    $region16: #{tpu_custom_call.1} parent=1 // pred_region
      _
    $region17: #{tpu_custom_call.1} parent=1 // pred_fallthru
      _
    // Predicated region
    $region18: #{tpu_custom_call.1} parent=1 // pred_check
      _
    $region19: #{tpu_custom_call.1} parent=1 // pred_check_branch
      %26 = sbr.rel (0) target = $region21
    $region20: #{tpu_custom_call.1} parent=1 // pred_region
      _
    $region21: #{tpu_custom_call.1} parent=1 // pred_fallthru
      _
    // Predicated region
    $region22: #{tpu_custom_call.1} parent=1 // pred_check
      _
    $region23: #{tpu_custom_call.1} parent=1 // pred_check_branch
      %28 = sbr.rel (0) target = $region25
    $region24: #{tpu_custom_call.1} parent=1 // pred_region
      _
    $region25: #{tpu_custom_call.1} parent=1 // pred_fallthru
      _
    // Predicated region
    $region26: #{tpu_custom_call.1} parent=1 // pred_check
      _
    $region27: #{tpu_custom_call.1} parent=1 // pred_check_branch
      %30 = sbr.rel (0) target = $region29
    $region28: #{tpu_custom_call.1} parent=1 // pred_region
      _
    $region29: #{tpu_custom_call.1} parent=1 // pred_fallthru
      _
    %v31 = vld [vmem:[%s0] sm:$0xff]
    %v32 = vld [vmem:[%s0 + $0x8] sm:$0xff]
    %v33 = vld [vmem:[%s0 + $0x10] sm:$0xff]
    %v34 = vld [vmem:[%s0 + $0x18] sm:$0xff]
    %v35 = vld [vmem:[%s0 + $0x20] sm:$0xff]
    %v36 = vld [vmem:[%s0 + $0x28] sm:$0xff]
    %v37 = vld [vmem:[%s0 + $0x30] sm:$0xff]
    %v38 = vld [vmem:[%s0 + $0x38] sm:$0xff]
    %v39 = vld [vmem:[%s0 + $0x40] sm:$0xff]
    %v40 = vld [vmem:[%s0 + $0x48] sm:$0xff]
    %v41 = vld [vmem:[%s0 + $0x50] sm:$0xff]
    %v42 = vld [vmem:[%s0 + $0x58] sm:$0xff]
    %v43 = vld [vmem:[%s0 + $0x60] sm:$0xff]
    %v44 = vld [vmem:[%s0 + $0x68] sm:$0xff]
    %v45 = vld [vmem:[%s0 + $0x70] sm:$0xff]
    %v46 = vld [vmem:[%s0 + $0x78] sm:$0xff]
    %v47 = vld [vmem:[%s2] sm:$0x1]
    %v48 = vld [vmem:[%s1] sm:$0x1]
    %vm49 = vcmask 785408
    %v51 = vsel %vm49, %v47, 0
    %v54 = vsel %vm49, %v31, 0
    %v57 = vsel %vm49, %v32, 0
    %v60 = vsel %vm49, %v33, 0
    %v63 = vsel %vm49, %v34, 0
    %v66 = vsel %vm49, %v35, 0
    %v69 = vsel %vm49, %v36, 0
    %v72 = vsel %vm49, %v37, 0
    %v75 = vsel %vm49, %v38, 0
    %v78 = vsel %vm49, %v39, 0
    %v81 = vsel %vm49, %v40, 0
    %v84 = vsel %vm49, %v41, 0
    %v87 = vsel %vm49, %v42, 0
    %v90 = vsel %vm49, %v43, 0
    %v93 = vsel %vm49, %v44, 0
    %v96 = vsel %vm49, %v45, 0
    %v99 = vsel %vm49, %v46, 0
    %101 = vmatprep.subr.mxu0 0.0
    %102 = vmatpush1.xpose.msra.mxu0 %v54
    %103 = vmatprep.subr.mxu0 0.0
    %104 = vmatpush1.xpose.msra.mxu0 %v57
    %105 = vmatprep.subr.mxu0 0.0
    %106 = vmatpush1.xpose.msra.mxu0 %v60
    %107 = vmatprep.subr.mxu0 0.0
    %108 = vmatpush1.xpose.msra.mxu0 %v63
    %109 = vmatprep.subr.mxu0 0.0
    %110 = vmatpush1.xpose.msra.mxu0 %v66
    %111 = vmatprep.subr.mxu0 0.0
    %112 = vmatpush1.xpose.msra.mxu0 %v69
    %113 = vmatprep.subr.mxu0 0.0
    %114 = vmatpush1.xpose.msra.mxu0 %v72
    %115 = vmatprep.subr.mxu0 0.0
    %116 = vmatpush1.xpose.msra.mxu0 %v75
    %117 = vmatprep.subr.mxu0 0.0
    %118 = vmatpush1.xpose.msra.mxu0 %v78
    %119 = vmatprep.subr.mxu0 0.0
    %120 = vmatpush1.xpose.msra.mxu0 %v81
    %121 = vmatprep.subr.mxu0 0.0
    %122 = vmatpush1.xpose.msra.mxu0 %v84
    %123 = vmatprep.subr.mxu0 0.0
    %124 = vmatpush1.xpose.msra.mxu0 %v87
    %125 = vmatprep.subr.mxu0 0.0
    %126 = vmatpush1.xpose.msra.mxu0 %v90
    %127 = vmatprep.subr.mxu0 0.0
    %128 = vmatpush1.xpose.msra.mxu0 %v93
    %129 = vmatprep.subr.mxu0 0.0
    %130 = vmatpush1.xpose.msra.mxu0 %v96
    %131 = vmatprep.subr.mxu0 0.0
    %132 = vmatpush1.xpose.msra.mxu0 %v99
    %133 = vmatprep.subr.mxu0 0.0
    %134 = vmatpush1.xpose.msra.mxu0 0.0
    %135 = vmatprep.subr.mxu0 0.0
    %136 = vmatpush1.xpose.msra.mxu0 0.0
    %137 = vmatprep.subr.mxu0 0.0
    %138 = vmatpush1.xpose.msra.mxu0 0.0
    %139 = vmatprep.subr.mxu0 0.0
    %140 = vmatpush1.xpose.msra.mxu0 0.0
    %141 = vmatprep.subr.mxu0 0.0
    %142 = vmatpush1.xpose.msra.mxu0 0.0
    %143 = vmatprep.subr.mxu0 0.0
    %144 = vmatpush1.xpose.msra.mxu0 0.0
    %145 = vmatprep.subr.mxu0 0.0
    %146 = vmatpush1.xpose.msra.mxu0 0.0
    %147 = vmatprep.subr.mxu0 0.0
    %148 = vmatpush1.xpose.msra.mxu0 0.0
    %149 = vmatprep.subr.mxu0 0.0
    %150 = vmatpush1.xpose.msra.mxu0 0.0
    %151 = vmatprep.subr.mxu0 0.0
    %152 = vmatpush1.xpose.msra.mxu0 0.0
    %153 = vmatprep.subr.mxu0 0.0
    %154 = vmatpush1.xpose.msra.mxu0 0.0
    %155 = vmatprep.subr.mxu0 0.0
    %156 = vmatpush1.xpose.msra.mxu0 0.0
    %157 = vmatprep.subr.mxu0 0.0
    %158 = vmatpush1.xpose.msra.mxu0 0.0
    %159 = vmatprep.subr.mxu0 0.0
    %160 = vmatpush1.xpose.msra.mxu0 0.0
    %161 = vmatprep.subr.mxu0 0.0
    %162 = vmatpush1.xpose.msra.mxu0 0.0
    %163 = vmatprep.subr.mxu0 0.0
    %164 = vmatpush1.xpose.msra.mxu0 0.0
    %165 = vmatprep.mubr.f32.mxu0 0.0
    %166 = vmatmul.mubr.f32.gmra.mrb[0].mxu0 %v51
    %v167 = vpop.f32.mrb[0].mxu0
    %v168 = vadd.f32 %v48, %v167
    %v169 = vpop.f32.mrb[0].mxu0
    %170 = vdwg.mxu0
    %171 = vst [vmem:[#allocation3] sm:$0x1] %v168
    %v172 = vld [vmem:[%s3] sm:$0xff]
    %v173 = vld [vmem:[%s3 + $0x8] sm:$0xff]
    %v174 = vld [vmem:[%s3 + $0x10] sm:$0xff]
    %v175 = vld [vmem:[%s3 + $0x18] sm:$0xff]
    %v176 = vld [vmem:[%s3 + $0x20] sm:$0xff]
    %v177 = vld [vmem:[%s3 + $0x28] sm:$0xff]
    %v178 = vld [vmem:[%s3 + $0x30] sm:$0xff]
    %v179 = vld [vmem:[%s3 + $0x38] sm:$0xff]
    %v180 = vld [vmem:[%s3 + $0x40] sm:$0xff]
    %v181 = vld [vmem:[%s3 + $0x48] sm:$0xff]
    %v182 = vld [vmem:[%s3 + $0x50] sm:$0xff]
    %v183 = vld [vmem:[%s3 + $0x58] sm:$0xff]
    %v184 = vld [vmem:[%s4] sm:$0x1]
    %v186 = vlaneseq
    %v187 = vshrl.u32 %v186, 7
    %v188 = vsub.s32 0, %v187
    %v189 = vrot.slane %v184, %v188
    %191 = vmatprep.subr.mxu0 0.0
    %192 = vmatpush1.msra.mxu0 %v172
    %193 = vmatprep.subr.mxu0 0.0
    %194 = vmatpush1.msra.mxu0 %v173
    %195 = vmatprep.subr.mxu0 0.0
    %196 = vmatpush1.msra.mxu0 %v174
    %197 = vmatprep.subr.mxu0 0.0
    %198 = vmatpush1.msra.mxu0 %v175
    %199 = vmatprep.subr.mxu0 0.0
    %200 = vmatpush1.msra.mxu0 %v176
    %201 = vmatprep.subr.mxu0 0.0
    %202 = vmatpush1.msra.mxu0 %v177
    %203 = vmatprep.subr.mxu0 0.0
    %204 = vmatpush1.msra.mxu0 %v178
    %205 = vmatprep.subr.mxu0 0.0
    %206 = vmatpush1.msra.mxu0 %v179
    %207 = vmatprep.subr.mxu0 0.0
    %208 = vmatpush1.msra.mxu0 %v180
    %209 = vmatprep.subr.mxu0 0.0
    %210 = vmatpush1.msra.mxu0 %v181
    %211 = vmatprep.subr.mxu0 0.0
    %212 = vmatpush1.msra.mxu0 %v182
    %213 = vmatprep.subr.mxu0 0.0
    %214 = vmatpush1.msra.mxu0 %v183
    %215 = vmatprep.subr.mxu0 0.0
    %216 = vmatpush1.msra.mxu0 0.0
    %217 = vmatprep.subr.mxu0 0.0
    %218 = vmatpush1.msra.mxu0 0.0
    %219 = vmatprep.subr.mxu0 0.0
    %220 = vmatpush1.msra.mxu0 0.0
    %221 = vmatprep.subr.mxu0 0.0
    %222 = vmatpush1.msra.mxu0 0.0
    %223 = vmatprep.subr.mxu0 0.0
    %224 = vmatpush1.msra.mxu0 0.0
    %225 = vmatprep.subr.mxu0 0.0
    %226 = vmatpush1.msra.mxu0 0.0
    %227 = vmatprep.subr.mxu0 0.0
    %228 = vmatpush1.msra.mxu0 0.0
    %229 = vmatprep.subr.mxu0 0.0
    %230 = vmatpush1.msra.mxu0 0.0
    %231 = vmatprep.subr.mxu0 0.0
    %232 = vmatpush1.msra.mxu0 0.0
    %233 = vmatprep.subr.mxu0 0.0
    %234 = vmatpush1.msra.mxu0 0.0
    %235 = vmatprep.subr.mxu0 0.0
    %236 = vmatpush1.msra.mxu0 0.0
    %237 = vmatprep.subr.mxu0 0.0
    %238 = vmatpush1.msra.mxu0 0.0
    %239 = vmatprep.subr.mxu0 0.0
    %240 = vmatpush1.msra.mxu0 0.0
    %241 = vmatprep.subr.mxu0 0.0
    %242 = vmatpush1.msra.mxu0 0.0
    %243 = vmatprep.subr.mxu0 0.0
    %244 = vmatpush1.msra.mxu0 0.0
    %245 = vmatprep.subr.mxu0 0.0
    %246 = vmatpush1.msra.mxu0 0.0
    %247 = vmatprep.subr.mxu0 0.0
    %248 = vmatpush1.msra.mxu0 0.0
    %249 = vmatprep.subr.mxu0 0.0
    %250 = vmatpush1.msra.mxu0 0.0
    %251 = vmatprep.subr.mxu0 0.0
    %252 = vmatpush1.msra.mxu0 0.0
    %253 = vmatprep.subr.mxu0 0.0
    %254 = vmatpush1.msra.mxu0 0.0
    %255 = vmatprep.mubr.f32.mxu0 0.0
    %256 = vmatmul.mubr.f32.gmra.mrb[0].mxu0 %v54
    %v257 = vpop.f32.mrb[0].mxu0
    %v258 = vadd.f32 %v189, %v257
    %v259 = vpop.f32.mrb[0].mxu0
    %260 = vmatprep.mubr.f32.mxu0 0.0
    %261 = vmatmul.mubr.f32.gmra.mrb[0].mxu0 %v57
    %v262 = vpop.f32.mrb[0].mxu0
    %v263 = vadd.f32 %v189, %v262
    %v264 = vpop.f32.mrb[0].mxu0
    %265 = vmatprep.mubr.f32.mxu0 0.0
    %266 = vmatmul.mubr.f32.gmra.mrb[0].mxu0 %v60
    %v267 = vpop.f32.mrb[0].mxu0
    %v268 = vadd.f32 %v189, %v267
    %v269 = vpop.f32.mrb[0].mxu0
    %270 = vmatprep.mubr.f32.mxu0 0.0
    %271 = vmatmul.mubr.f32.gmra.mrb[0].mxu0 %v63
    %v272 = vpop.f32.mrb[0].mxu0
    %v273 = vadd.f32 %v189, %v272
    %v274 = vpop.f32.mrb[0].mxu0
    %275 = vmatprep.mubr.f32.mxu0 0.0
    %276 = vmatmul.mubr.f32.gmra.mrb[0].mxu0 %v66
    %v277 = vpop.f32.mrb[0].mxu0
    %v278 = vadd.f32 %v189, %v277
    %v279 = vpop.f32.mrb[0].mxu0
    %280 = vmatprep.mubr.f32.mxu0 0.0
    %281 = vmatmul.mubr.f32.gmra.mrb[0].mxu0 %v69
    %v282 = vpop.f32.mrb[0].mxu0
    %v283 = vadd.f32 %v189, %v282
    %v284 = vpop.f32.mrb[0].mxu0
    %285 = vmatprep.mubr.f32.mxu0 0.0
    %286 = vmatmul.mubr.f32.gmra.mrb[0].mxu0 %v72
    %v287 = vpop.f32.mrb[0].mxu0
    %v288 = vadd.f32 %v189, %v287
    %v289 = vpop.f32.mrb[0].mxu0
    %290 = vmatprep.mubr.f32.mxu0 0.0
    %291 = vmatmul.mubr.f32.gmra.mrb[0].mxu0 %v75
    %v292 = vpop.f32.mrb[0].mxu0
    %v293 = vadd.f32 %v189, %v292
    %v294 = vpop.f32.mrb[0].mxu0
    %295 = vmatprep.mubr.f32.mxu0 0.0
    %296 = vmatmul.mubr.f32.gmra.mrb[0].mxu0 %v78
    %v297 = vpop.f32.mrb[0].mxu0
    %v298 = vadd.f32 %v189, %v297
    %v299 = vpop.f32.mrb[0].mxu0
    %300 = vmatprep.mubr.f32.mxu0 0.0
    %301 = vmatmul.mubr.f32.gmra.mrb[0].mxu0 %v81
    %v302 = vpop.f32.mrb[0].mxu0
    %v303 = vadd.f32 %v189, %v302
    %v304 = vpop.f32.mrb[0].mxu0
    %305 = vmatprep.mubr.f32.mxu0 0.0
    %306 = vmatmul.mubr.f32.gmra.mrb[0].mxu0 %v84
    %v307 = vpop.f32.mrb[0].mxu0
    %v308 = vadd.f32 %v189, %v307
    %v309 = vpop.f32.mrb[0].mxu0
    %310 = vmatprep.mubr.f32.mxu0 0.0
    %311 = vmatmul.mubr.f32.gmra.mrb[0].mxu0 %v87
    %v312 = vpop.f32.mrb[0].mxu0
    %v313 = vadd.f32 %v189, %v312
    %v314 = vpop.f32.mrb[0].mxu0
    %315 = vmatprep.mubr.f32.mxu0 0.0
    %316 = vmatmul.mubr.f32.gmra.mrb[0].mxu0 %v90
    %v317 = vpop.f32.mrb[0].mxu0
    %v318 = vadd.f32 %v189, %v317
    %v319 = vpop.f32.mrb[0].mxu0
    %320 = vmatprep.mubr.f32.mxu0 0.0
    %321 = vmatmul.mubr.f32.gmra.mrb[0].mxu0 %v93
    %v322 = vpop.f32.mrb[0].mxu0
    %v323 = vadd.f32 %v189, %v322
    %v324 = vpop.f32.mrb[0].mxu0
    %325 = vmatprep.mubr.f32.mxu0 0.0
    %326 = vmatmul.mubr.f32.gmra.mrb[0].mxu0 %v96
    %v327 = vpop.f32.mrb[0].mxu0
    %v328 = vadd.f32 %v189, %v327
    %v329 = vpop.f32.mrb[0].mxu0
    %330 = vmatprep.mubr.f32.mxu0 0.0
    %331 = vmatmul.mubr.f32.gmra.mrb[0].mxu0 %v99
    %v332 = vpop.f32.mrb[0].mxu0
    %v333 = vadd.f32 %v189, %v332
    %v334 = vpop.f32.mrb[0].mxu0
    %335 = vdwg.mxu0
    %v336 = vmax.f32 %v258, 0.0
    %v337 = vmax.f32 %v263, 0.0
    %v338 = vmax.f32 %v268, 0.0
    %v339 = vmax.f32 %v273, 0.0
    %v340 = vmax.f32 %v278, 0.0
    %v341 = vmax.f32 %v283, 0.0
    %v342 = vmax.f32 %v288, 0.0
    %v343 = vmax.f32 %v293, 0.0
    %v344 = vmax.f32 %v298, 0.0
    %v345 = vmax.f32 %v303, 0.0
    %v346 = vmax.f32 %v308, 0.0
    %v347 = vmax.f32 %v313, 0.0
    %v348 = vmax.f32 %v318, 0.0
    %v349 = vmax.f32 %v323, 0.0
    %v350 = vmax.f32 %v328, 0.0
    %v351 = vmax.f32 %v333, 0.0
    %v352 = vld [vmem:[%s5] sm:$0x1]
    %s353 = sld [smem:[#allocation2]]
    %v354 = vstv %s353
    %vm355 = vcmask 523264
    %v357 = vsel %vm355, %v352, 0
    %v360 = vsel %vm355, %v336, 0
    %v363 = vsel %vm355, %v337, 0
    %v366 = vsel %vm355, %v338, 0
    %v369 = vsel %vm355, %v339, 0
    %v372 = vsel %vm355, %v340, 0
    %v375 = vsel %vm355, %v341, 0
    %v378 = vsel %vm355, %v342, 0
    %v381 = vsel %vm355, %v343, 0
    %v384 = vsel %vm355, %v344, 0
    %v387 = vsel %vm355, %v345, 0
    %v390 = vsel %vm355, %v346, 0
    %v393 = vsel %vm355, %v347, 0
    %v396 = vsel %vm355, %v348, 0
    %v399 = vsel %vm355, %v349, 0
    %v402 = vsel %vm355, %v350, 0
    %v405 = vsel %vm355, %v351, 0
    %407 = vmatprep.subr.mxu0 0.0
    %408 = vmatpush1.xpose.msra.mxu0 %v360
    %409 = vmatprep.subr.mxu0 0.0
    %410 = vmatpush1.xpose.msra.mxu0 %v363
    %411 = vmatprep.subr.mxu0 0.0
    %412 = vmatpush1.xpose.msra.mxu0 %v366
    %413 = vmatprep.subr.mxu0 0.0
    %414 = vmatpush1.xpose.msra.mxu0 %v369
    %415 = vmatprep.subr.mxu0 0.0
    %416 = vmatpush1.xpose.msra.mxu0 %v372
    %417 = vmatprep.subr.mxu0 0.0
    %418 = vmatpush1.xpose.msra.mxu0 %v375
    %419 = vmatprep.subr.mxu0 0.0
    %420 = vmatpush1.xpose.msra.mxu0 %v378
    %421 = vmatprep.subr.mxu0 0.0
    %422 = vmatpush1.xpose.msra.mxu0 %v381
    %423 = vmatprep.subr.mxu0 0.0
    %424 = vmatpush1.xpose.msra.mxu0 %v384
    %425 = vmatprep.subr.mxu0 0.0
    %426 = vmatpush1.xpose.msra.mxu0 %v387
    %427 = vmatprep.subr.mxu0 0.0
    %428 = vmatpush1.xpose.msra.mxu0 %v390
    %429 = vmatprep.subr.mxu0 0.0
    %430 = vmatpush1.xpose.msra.mxu0 %v393
    %431 = vmatprep.subr.mxu0 0.0
    %432 = vmatpush1.xpose.msra.mxu0 %v396
    %433 = vmatprep.subr.mxu0 0.0
    %434 = vmatpush1.xpose.msra.mxu0 %v399
    %435 = vmatprep.subr.mxu0 0.0
    %436 = vmatpush1.xpose.msra.mxu0 %v402
    %437 = vmatprep.subr.mxu0 0.0
    %438 = vmatpush1.xpose.msra.mxu0 %v405
    %439 = vmatprep.subr.mxu0 0.0
    %440 = vmatpush1.xpose.msra.mxu0 0.0
    %441 = vmatprep.subr.mxu0 0.0
    %442 = vmatpush1.xpose.msra.mxu0 0.0
    %443 = vmatprep.subr.mxu0 0.0
    %444 = vmatpush1.xpose.msra.mxu0 0.0
    %445 = vmatprep.subr.mxu0 0.0
    %446 = vmatpush1.xpose.msra.mxu0 0.0
    %447 = vmatprep.subr.mxu0 0.0
    %448 = vmatpush1.xpose.msra.mxu0 0.0
    %449 = vmatprep.subr.mxu0 0.0
    %450 = vmatpush1.xpose.msra.mxu0 0.0
    %451 = vmatprep.subr.mxu0 0.0
    %452 = vmatpush1.xpose.msra.mxu0 0.0
    %453 = vmatprep.subr.mxu0 0.0
    %454 = vmatpush1.xpose.msra.mxu0 0.0
    %455 = vmatprep.subr.mxu0 0.0
    %456 = vmatpush1.xpose.msra.mxu0 0.0
    %457 = vmatprep.subr.mxu0 0.0
    %458 = vmatpush1.xpose.msra.mxu0 0.0
    %459 = vmatprep.subr.mxu0 0.0
    %460 = vmatpush1.xpose.msra.mxu0 0.0
    %461 = vmatprep.subr.mxu0 0.0
    %462 = vmatpush1.xpose.msra.mxu0 0.0
    %463 = vmatprep.subr.mxu0 0.0
    %464 = vmatpush1.xpose.msra.mxu0 0.0
    %465 = vmatprep.subr.mxu0 0.0
    %466 = vmatpush1.xpose.msra.mxu0 0.0
    %467 = vmatprep.subr.mxu0 0.0
    %468 = vmatpush1.xpose.msra.mxu0 0.0
    %469 = vmatprep.subr.mxu0 0.0
    %470 = vmatpush1.xpose.msra.mxu0 0.0
    %471 = vmatprep.mubr.f32.mxu0 0.0
    %472 = vmatmul.mubr.f32.gmra.mrb[0].mxu0 %v357
    %v473 = vpop.f32.mrb[0].mxu0
    %v474 = vadd.f32 %v354, %v473
    %v475 = vpop.f32.mrb[0].mxu0
    %476 = vdwg.mxu0
    %477 = vst [vmem:[#allocation5] sm:$0x1] %v474
    // Predicated region
    $region30: #{tpu_custom_call.1} parent=1 // pred_check
      _
    $region31: #{tpu_custom_call.1} parent=1 // pred_check_branch
      %479 = sbr.rel (0) target = $region33
    $region32: #{tpu_custom_call.1} parent=1 // pred_region
      %s481 = ssub.s32 16, 16
      %482 = vsyncadd [#allocation4], %s481
      %s484 = sshll.u32 [#allocation3], 4
      %s485 = int_to_ptr.vmem [resolvable:$true] %s484
      %487 = dma.vmem_to_hbm [thread:$0]  %s485, 16, %s7, [#allocation4]
    $region33: #{tpu_custom_call.1} parent=1 // pred_fallthru
      _
    // Predicated region
    $region34: #{tpu_custom_call.1} parent=1 // pred_check
      _
    $region35: #{tpu_custom_call.1} parent=1 // pred_check_branch
      %489 = sbr.rel (0) target = $region37
    $region36: #{tpu_custom_call.1} parent=1 // pred_region
      %s491 = ssub.s32 16, 16
      %492 = vsyncadd [#allocation6], %s491
      %s494 = sshll.u32 [#allocation5], 4
      %s495 = int_to_ptr.vmem [resolvable:$true] %s494
      %497 = dma.vmem_to_hbm [thread:$0]  %s495, 16, %s8, [#allocation6]
    $region37: #{tpu_custom_call.1} parent=1 // pred_fallthru
      _
    // Predicated region
    $region38: #{tpu_custom_call.1} parent=1 // pred_check
      _
    $region39: #{tpu_custom_call.1} parent=1 // pred_check_branch
      %499 = sbr.rel (0) target = $region41
    $region40: #{tpu_custom_call.1} parent=1 // pred_region
      %500 = dma.done [#allocation4], 16
    $region41: #{tpu_custom_call.1} parent=1 // pred_fallthru
      _
    // Predicated region
    $region42: #{tpu_custom_call.1} parent=1 // pred_check
      _
    $region43: #{tpu_custom_call.1} parent=1 // pred_check_branch
      %502 = sbr.rel (0) target = $region45
    $region44: #{tpu_custom_call.1} parent=1 // pred_region
      %503 = dma.done [#allocation6], 16
    $region45: #{tpu_custom_call.1} parent=1 // pred_fallthru
      _
    %504 = vsyncpa [#allocation4], 1
    %505 = vsyncpa [#allocation6], 1

</llo_original>
